<compile_context>
chip_gen: v7x
topology: tpu7x:2x2x1
jax: 0.10.0
libtpu: 0.0.40
codegen_flags: <defaults>
</compile_context>

<pallas_src>
import numpy as np
import jax
import jax.numpy as jnp
from jax.experimental import pallas as pl
from jax.experimental.pallas import tpu as pltpu


# ----------------------------- schedule ------------------------------------
def make_schedule(beta_1, beta_T, T):
    """Mirror of the PyTorch buffers (computed in float64, cast to float32)."""
    betas = np.linspace(beta_1, beta_T, T, dtype=np.float64)
    alphas = 1.0 - betas
    alphas_bar = np.cumprod(alphas)
    alphas_bar_prev = np.concatenate([[1.0], alphas_bar])[:T]
    coeff1 = np.sqrt(1.0 / alphas)
    coeff2 = coeff1 * (1.0 - alphas) / np.sqrt(1.0 - alphas_bar)
    posterior_var = betas * (1.0 - alphas_bar_prev) / (1.0 - alphas_bar)
    # var = cat([posterior_var[1:2], betas[1:]])
    var = np.concatenate([posterior_var[1:2], betas[1:]])
    return (coeff1.astype(np.float32),
            coeff2.astype(np.float32),
            var.astype(np.float32))


# ----------------------------- Pallas kernel -------------------------------
def _fused_sampler_kernel(coef_ref, x0_ref, noise_ref, wbd_ref, temb_ref,
                          out_ref):
    # coef_ref : SMEM (3, T)    reverse-time table rows: coeff1, coeff2, sqrt(var)
    # x0_ref   : VMEM (BC, HW)  initial x_T (constant block across the grid)
    # noise_ref: VMEM (BC, HW)  noise for THIS step (blocked over t; zeros at t=0)
    # wbd_ref  : VMEM (BC, BC)  block-diagonal 1x1-conv weight (kron(I_B, W))
    # temb_ref : VMEM (BC, 1)   time-embedding bias for THIS step
    # out_ref  : VMEM (BC, HW)  running x_t (resident across the whole t loop);
    #                           holds the clipped x_0 after the last step.
    s = pl.program_id(0)
    last = pl.num_programs(0) - 1

    @pl.when(s == 0)
    def _init():
        out_ref[...] = x0_ref[...]

    x = out_ref[...]

    # synthetic eps model: tanh(block-diag 1x1 conv + time bias)
    eps = jnp.tanh(
        jnp.dot(wbd_ref[...], x, preferred_element_type=jnp.float32)
        + temb_ref[...])

    c1 = coef_ref[0, s]
    c2 = coef_ref[1, s]
    sv = coef_ref[2, s]
    # x_{t-1} = c1 * x_t - c2 * eps + sqrt(var) * noise
    x_new = c1 * x - c2 * eps + sv * noise_ref[...]
    out_ref[...] = x_new

    @pl.when(s == last)
    def _finalize():
        out_ref[...] = jnp.clip(x_new, -1.0, 1.0)


def make_fused_sampler(T, BC, HW):
    grid_spec = pltpu.PrefetchScalarGridSpec(
        num_scalar_prefetch=0,
        grid=(T,),
        in_specs=[
            pl.BlockSpec(memory_space=pltpu.MemorySpace.SMEM),           # coef (3, T)
            pl.BlockSpec((BC, HW), lambda s: (0, 0)),                    # x_T
            pl.BlockSpec((pl.Squeezed(), BC, HW), lambda s: (s, 0, 0)),  # noise[t]
            pl.BlockSpec((BC, BC), lambda s: (0, 0)),                    # W block-diag
            pl.BlockSpec((pl.Squeezed(), BC, 1), lambda s: (s, 0, 0)),   # temb[t]
        ],
        out_specs=pl.BlockSpec((BC, HW), lambda s: (0, 0)),
    )
    fn = pl.pallas_call(
        _fused_sampler_kernel,
        out_shape=jax.ShapeDtypeStruct((BC, HW), jnp.float32),
        grid_spec=grid_spec,
        # The t axis is a serial recurrence -> must be "arbitrary".
        # TODO(synk): at realistic image sizes, add a pixel-tile grid axis
        # marked "parallel" (megacore sharding) and size tiles against VMEM.
        compiler_params=pltpu.CompilerParams(
            dimension_semantics=("arbitrary",)),
    )
    return jax.jit(fn)


# ----------------------------- sampler (forward) ---------------------------
def gaussian_diffusion_sample(x_T, w, time_emb, beta_1, beta_T, T, noise):
    """Reproduces GaussianDiffusionSampler.forward semantics.

    noise: (T, B, C, H*W), reverse-time order (index s <-> time_step T-1-s);
           the last slot (time_step == 0) must be zeros.
    """
    B, C, H, W = x_T.shape
    HW = H * W
    BC = B * C
    coeff1, coeff2, var = make_schedule(beta_1, beta_T, T)

    # Reverse-time tables: grid step s corresponds to time_step = T-1-s.
    coef_table = jnp.asarray(
        np.stack([coeff1[::-1], coeff2[::-1], np.sqrt(var)[::-1]], axis=0),
        dtype=jnp.float32)                                         # (3, T)

    temb_rev = time_emb[::-1]                                      # (T, C)
    # row index r = b*C + c  ->  bias temb[c]
    temb_bc = jnp.tile(temb_rev, (1, B)).reshape(T, BC, 1).astype(jnp.float32)

    # block-diagonal weight: (W_bd @ x)[b*C+i] = sum_j W[i, j] * x[b*C+j]
    w_bd = jnp.kron(jnp.eye(B, dtype=jnp.float32), w.astype(jnp.float32))

    x0 = x_T.reshape(BC, HW).astype(jnp.float32)
    noise_bc = noise.reshape(T, BC, HW).astype(jnp.float32)

    sampler = make_fused_sampler(T, BC, HW)
    x_0 = sampler(coef_table, x0, noise_bc, w_bd, temb_bc)
    return x_0.reshape(B, C, H, W)


# ----------------------------- pure-JAX reference --------------------------
def reference_sample(x_T, w, time_emb, beta_1, beta_T, T, noise):
    B, C, H, W = x_T.shape
    HW = H * W
    coeff1, coeff2, var = make_schedule(beta_1, beta_T, T)
    x = x_T.reshape(B, C, HW).astype(jnp.float32)
    for s, time_step in enumerate(reversed(range(T))):
        temb = time_emb[time_step].reshape(1, C, 1)
        eps = jnp.tanh(jnp.einsum('oc,bcp->bop', w, x) + temb)
        mean = coeff1[time_step] * x - coeff2[time_step] * eps
        x = mean + np.sqrt(var[time_step]) * noise[s].reshape(B, C, HW)
    return jnp.clip(x.reshape(B, C, H, W), -1.0, 1.0)


# ----------------------------- main -----------------------------------------
if __name__ == "__main__":
    B, C, H, W = 2, 4, 16, 16
    T = 8
    beta_1, beta_T = 1e-4, 0.02
    HW = H * W

    root = jax.random.PRNGKey(0)
    k_x, k_w, k_temb, k_noise = jax.random.split(root, 4)

    x_T = jax.random.normal(k_x, (B, C, H, W), dtype=jnp.float32)
    # deterministic synthetic model parameters
    w = 0.3 * jax.random.normal(k_w, (C, C), dtype=jnp.float32)
    time_emb = 0.1 * jax.random.normal(k_temb, (T, C), dtype=jnp.float32)

    # All per-step noise generated in one shot (reverse-time order); the last
    # slot corresponds to time_step == 0 where the module uses noise = 0.
    noise_body = jax.random.normal(k_noise, (T - 1, B, C, HW), dtype=jnp.float32)
    noise = jnp.concatenate(
        [noise_body, jnp.zeros((1, B, C, HW), dtype=jnp.float32)], axis=0)

    out = gaussian_diffusion_sample(x_T, w, time_emb, beta_1, beta_T, T, noise)
    out = jax.block_until_ready(out)

    ref = reference_sample(x_T, w, time_emb, beta_1, beta_T, T, noise)
    ref = jax.block_until_ready(ref)

    np.testing.assert_allclose(np.asarray(out), np.asarray(ref),
                               rtol=1e-5, atol=1e-5)
    assert not np.isnan(np.asarray(out)).any(), "nan in tensor."
    print("KERNEL_OK")
</pallas_src>

<mosaic_0001>
module attributes {stable_mosaic.version = 11 : i64} {
  func.func @_fused_sampler_kernel(%arg0: i32, %arg1: memref<3x8xf32, #tpu.memory_space<smem>>, %arg2: memref<8x256xf32, #tpu.memory_space<vmem>>, %arg3: memref<1x8x256xf32, #tpu.memory_space<vmem>>, %arg4: memref<8x8xf32, #tpu.memory_space<vmem>>, %arg5: memref<1x8x1xf32, #tpu.memory_space<vmem>>, %arg6: memref<8x256xf32, #tpu.memory_space<vmem>>) attributes {dimension_semantics = [#tpu.dimension_semantics<arbitrary>], iteration_bounds = array<i64: 8>, scalar_prefetch = 0 : i64, scratch_operands = 0 : i64, tpu.core_type = #tpu.core_type<tc>, window_params = [{transform_indices = @transform_0, window_bounds = array<i64: 3, 8>}, {pipeline_mode = #tpu.pipeline_mode<synchronous>, transform_indices = @transform_1, window_bounds = array<i64: 8, 256>}, {transform_indices = @transform_2, window_bounds = array<i64: 1, 8, 256>}, {pipeline_mode = #tpu.pipeline_mode<synchronous>, transform_indices = @transform_3, window_bounds = array<i64: 8, 8>}, {transform_indices = @transform_4, window_bounds = array<i64: 1, 8, 1>}, {pipeline_mode = #tpu.pipeline_mode<synchronous>, transform_indices = @transform_5, window_bounds = array<i64: 8, 256>}]} {
    %c0_i32 = arith.constant 0 : i32
    %0 = arith.cmpi eq, %arg0, %c0_i32 : i32
    %1 = arith.extui %0 : i1 to i32
    %c0_i32_0 = arith.constant 0 : i32
    %2 = arith.cmpi ne, %1, %c0_i32_0 : i32
    scf.if %2 {
      %c0_14 = arith.constant 0 : index
      %c0_15 = arith.constant 0 : index
      %31 = vector.load %arg2[%c0_14, %c0_15] : memref<8x256xf32, #tpu.memory_space<vmem>>, vector<8x256xf32>
      %c0_16 = arith.constant 0 : index
      %c0_17 = arith.constant 0 : index
      %32 = vector.load %arg6[%c0_16, %c0_17] : memref<8x256xf32, #tpu.memory_space<vmem>>, vector<8x256xf32>
      tpu.vector_store %arg6[%c0_16, %c0_17], %31 {strides = array<i32>} : memref<8x256xf32, #tpu.memory_space<vmem>>, vector<8x256xf32>,
    } else {
    }
    %c0 = arith.constant 0 : index
    %c0_1 = arith.constant 0 : index
    %3 = vector.load %arg6[%c0, %c0_1] : memref<8x256xf32, #tpu.memory_space<vmem>>, vector<8x256xf32>
    %c0_2 = arith.constant 0 : index
    %c0_3 = arith.constant 0 : index
    %4 = vector.load %arg4[%c0_2, %c0_3] : memref<8x8xf32, #tpu.memory_space<vmem>>, vector<8x8xf32>
    %cst = arith.constant dense<0.000000e+00> : vector<8x256xf32>
    %5 = tpu.matmul %4, %3, %cst {dimension_numbers = #tpu.dot_dimension_numbers<[1], [0], [0], [1], [0, 0, 1, 1], [], []>} : vector<8x8xf32>, vector<8x256xf32>, vector<8x256xf32> -> vector<8x256xf32>
    %c0_4 = arith.constant 0 : index
    %c0_5 = arith.constant 0 : index
    %c0_6 = arith.constant 0 : index
    %6 = vector.load %arg5[%c0_4, %c0_5, %c0_6] : memref<1x8x1xf32, #tpu.memory_space<vmem>>, vector<1x8x1xf32>
    %7 = vector.shape_cast %6 : vector<1x8x1xf32> to vector<8x1xf32>
    %8 = vector.broadcast %7 : vector<8x1xf32> to vector<8x256xf32>
    %9 = arith.addf %5, %8 : vector<8x256xf32>
    %10 = math.tanh %9 : vector<8x256xf32>
    %c0_7 = arith.constant 0 : index
    %11 = arith.index_cast %arg0 : i32 to index
    %12 = memref.load %arg1[%c0_7, %11] : memref<3x8xf32, #tpu.memory_space<smem>>
    %c1 = arith.constant 1 : index
    %13 = arith.index_cast %arg0 : i32 to index
    %14 = memref.load %arg1[%c1, %13] : memref<3x8xf32, #tpu.memory_space<smem>>
    %c2 = arith.constant 2 : index
    %15 = arith.index_cast %arg0 : i32 to index
    %16 = memref.load %arg1[%c2, %15] : memref<3x8xf32, #tpu.memory_space<smem>>
    %17 = vector.broadcast %12 : f32 to vector<8x256xf32>
    %18 = arith.mulf %17, %3 : vector<8x256xf32>
    %19 = vector.broadcast %14 : f32 to vector<8x256xf32>
    %20 = arith.mulf %19, %10 : vector<8x256xf32>
    %21 = arith.subf %18, %20 : vector<8x256xf32>
    %c0_8 = arith.constant 0 : index
    %c0_9 = arith.constant 0 : index
    %c0_10 = arith.constant 0 : index
    %22 = vector.load %arg3[%c0_8, %c0_9, %c0_10] : memref<1x8x256xf32, #tpu.memory_space<vmem>>, vector<1x8x256xf32>
    %23 = vector.shape_cast %22 : vector<1x8x256xf32> to vector<8x256xf32>
    %24 = vector.broadcast %16 : f32 to vector<8x256xf32>
    %25 = arith.mulf %24, %23 : vector<8x256xf32>
    %26 = arith.addf %21, %25 : vector<8x256xf32>
    %c0_11 = arith.constant 0 : index
    %c0_12 = arith.constant 0 : index
    %27 = vector.load %arg6[%c0_11, %c0_12] : memref<8x256xf32, #tpu.memory_space<vmem>>, vector<8x256xf32>
    tpu.vector_store %arg6[%c0_11, %c0_12], %26 {strides = array<i32>} : memref<8x256xf32, #tpu.memory_space<vmem>>, vector<8x256xf32>,
    %c7_i32 = arith.constant 7 : i32
    %28 = arith.cmpi eq, %arg0, %c7_i32 : i32
    %29 = arith.extui %28 : i1 to i32
    %c0_i32_13 = arith.constant 0 : i32
    %30 = arith.cmpi ne, %29, %c0_i32_13 : i32
    scf.if %30 {
      %cst_14 = arith.constant -1.000000e+00 : f32
      %cst_15 = arith.constant 1.000000e+00 : f32
      %31 = vector.broadcast %cst_14 : f32 to vector<8x256xf32>
      %32 = arith.maximumf %31, %26 : vector<8x256xf32>
      %33 = vector.broadcast %cst_15 : f32 to vector<8x256xf32>
      %34 = arith.minimumf %33, %32 : vector<8x256xf32>
      %c0_16 = arith.constant 0 : index
      %c0_17 = arith.constant 0 : index
      %35 = vector.load %arg6[%c0_16, %c0_17] : memref<8x256xf32, #tpu.memory_space<vmem>>, vector<8x256xf32>
      tpu.vector_store %arg6[%c0_16, %c0_17], %34 {strides = array<i32>} : memref<8x256xf32, #tpu.memory_space<vmem>>, vector<8x256xf32>,
    } else {
    }
    return
  }
  func.func @transform_0(%arg0: i32) -> (i32, i32) {
    %c0_i32 = arith.constant 0 : i32
    %c0_i32_0 = arith.constant 0 : i32
    %c0_i32_1 = arith.constant 0 : i32
    return %c0_i32, %c0_i32_0 : i32, i32
  }
  func.func @transform_1(%arg0: i32) -> (i32, i32) {
    %c0_i32 = arith.constant 0 : i32
    %c0_i32_0 = arith.constant 0 : i32
    %c0_i32_1 = arith.constant 0 : i32
    return %c0_i32, %c0_i32_0 : i32, i32
  }
  func.func @transform_2(%arg0: i32) -> (i32, i32, i32) {
    %c0_i32 = arith.constant 0 : i32
    %c0_i32_0 = arith.constant 0 : i32
    %c0_i32_1 = arith.constant 0 : i32
    return %arg0, %c0_i32, %c0_i32_0 : i32, i32, i32
  }
  func.func @transform_3(%arg0: i32) -> (i32, i32) {
    %c0_i32 = arith.constant 0 : i32
    %c0_i32_0 = arith.constant 0 : i32
    %c0_i32_1 = arith.constant 0 : i32
    return %c0_i32, %c0_i32_0 : i32, i32
  }
  func.func @transform_4(%arg0: i32) -> (i32, i32, i32) {
    %c0_i32 = arith.constant 0 : i32
    %c0_i32_0 = arith.constant 0 : i32
    %c0_i32_1 = arith.constant 0 : i32
    return %arg0, %c0_i32, %c0_i32_0 : i32, i32, i32
  }
  func.func @transform_5(%arg0: i32) -> (i32, i32) {
    %c0_i32 = arith.constant 0 : i32
    %c0_i32_0 = arith.constant 0 : i32
    %c0_i32_1 = arith.constant 0 : i32
    return %c0_i32, %c0_i32_0 : i32, i32
  }
}

</mosaic_0001>

<llo_original>
// kernel: tpu_custom_call.1
$region0: #{tpu_custom_call.1}
  #allocation0 [shape = 'u32[]', space=smem, size = 0x4, offset = 0x4, fixed_abs, tag = 'smem constant byte address 0x4 - core index']
  #allocation1 [shape = 'u32[144,128]{1,0:T(1,128)}', space=vmem, size = 0x12000, scoped, tag = 'internal scratch']
  %s0 = inlined_call_operand.vmem [shape: f32[3,8], index: 0, kind: input, shape index: {}]
  %s1 = inlined_call_operand.vmem [shape: f32[8,256], index: 1, kind: input, shape index: {}]
  %s2 = inlined_call_operand.hbm [shape: f32[8,8,256], index: 2, kind: input, shape index: {}]
  %s3 = inlined_call_operand.vmem [shape: f32[8,8], index: 3, kind: input, shape index: {}]
  %s4 = inlined_call_operand.vmem [shape: f32[8,8,1], index: 4, kind: input, shape index: {}]
  %s5 = inlined_call_operand.hbm [shape: f32[8,256], index: 5, kind: output, shape index: {}]
  %s6 = sld [smem:[#allocation0]]
  $region69: #{tpu_custom_call.1} parent=0
    _
  %s8 = ssub.s32 1, %s6
  %s9 = scalar_select 0, %s8, %s6
  $region1: #{tpu_custom_call.1} parent=0
    #allocation2 [shape = 'u8[2048]{0}', space=smem, size = 0x800, scoped, tag = 'input window, operand 0, single buffered']
    #allocation3 [shape = 's32[2]{0}', space=sflag, size = 0x8, scoped, tag = 'scoped memory for tpu_custom_call.1']
    #allocation4 [shape = 's32[2]{0}', space=sflag, size = 0x8, scoped, tag = 'scoped memory for tpu_custom_call.1']
    #allocation5 [shape = 's32[2]{0}', space=sflag, size = 0x8, scoped, tag = 'scoped memory for tpu_custom_call.1']
    #allocation6 [shape = 'u8[16384]{0}', space=vmem, size = 0x4000, scoped, tag = 'input window, operand 2']
    #allocation7 [shape = 'u8[8192]{0}', space=vmem, size = 0x2000, scoped, tag = 'output window, operand 0, single buffered']
    %10 = vsyncpa [#allocation5], 0
    %11 = vsyncpa [#allocation3], 0
    %s12 = scalar_lea.sflag [#allocation3], 1
    %13 = vsyncpa %s12, 0
    %14 = vsyncpa [#allocation4], 0
    loop: start=0, step=1, limit=10
    $region2: #{tpu_custom_call.1} parent=1 // loop_pre_header
      _
    $region3: #{tpu_custom_call.1} parent=1 // loop_header
      %s16 = sphi 0, %s20
      %p17 = scmp.ge.s32.totalorder %s16, 10
      %s24 = sphi 0, %s24
      %s26 = sphi 0, %s24
      %s27 = sphi 0, %s26
      %s41 = sphi 0, %s27
      %s45 = sphi 0, %s45
      %s47 = sphi 0, %s45
      %s48 = sphi 0, %s47
      %s62 = sphi 0, %s48
      %s68 = sphi 0, %s70
      %s71 = sphi 0, %s68
      %s72 = sphi 0, %s71
      %s88 = sphi 0, %s72
      %s92 = sphi 0, %s92
      %s94 = sphi 0, %s92
      %s95 = sphi 0, %s94
      %s109 = sphi 0, %s95
      %s115 = sphi 0, %s117
      %s118 = sphi 0, %s115
      %s119 = sphi 0, %s118
      %s135 = sphi 0, %s119
      %s139 = sphi 0, %s139
      %s141 = sphi 0, %s139
      %s142 = sphi 0, %s141
      %s156 = sphi 0, %s142
    $region4: #{tpu_custom_call.1} parent=1 // loop_header_branch
      %19 = sbr.rel (%p17) target = $region8
    $region5: #{tpu_custom_call.1} parent=1 // loop_body
      %s21 = ssub.s32 %s16, 1
      %s22 = ssub.s32 %s16, 2
      %s23 = sadd.s32 %s16, 1
      %s25 = sadd.s32 %s24, 1
      %p28 = scmp.eq.s32.totalorder %s16, 7
      %p29 = scmp.ne.s32.totalorder %s24, %s26
      %p30 = scmp.eq.s32.totalorder %s16, 0
      %p31 = por %p29, %p30
      %p32 = scmp.ne.s32.totalorder %s24, %s26
      %p33 = scmp.eq.s32.totalorder %s21, 7
      %p34 = por %p32, %p33
      %p35 = scmp.ne.s32.totalorder %s26, %s27
      %p36 = scmp.eq.s32.totalorder %s21, 0
      %p37 = por %p35, %p36
      %p38 = scmp.ne.s32.totalorder %s26, %s27
      %p39 = scmp.eq.s32.totalorder %s22, 7
      %p40 = por %p38, %p39
      %p42 = scmp.ne.s32.totalorder %s27, %s41
      %p43 = scmp.eq.s32.totalorder %s22, 0
      %p44 = por %p42, %p43
      %s46 = sadd.s32 %s45, 1
      %p49 = scmp.eq.s32.totalorder %s16, 7
      %p50 = scmp.ne.s32.totalorder %s45, %s47
      %p51 = scmp.eq.s32.totalorder %s16, 0
      %p52 = por %p50, %p51
      %p53 = scmp.ne.s32.totalorder %s45, %s47
      %p54 = scmp.eq.s32.totalorder %s21, 7
      %p55 = por %p53, %p54
      %p56 = scmp.ne.s32.totalorder %s47, %s48
      %p57 = scmp.eq.s32.totalorder %s21, 0
      %p58 = por %p56, %p57
      %p59 = scmp.ne.s32.totalorder %s47, %s48
      %p60 = scmp.eq.s32.totalorder %s22, 7
      %p61 = por %p59, %p60
      %p63 = scmp.ne.s32.totalorder %s48, %s62
      %p64 = scmp.eq.s32.totalorder %s22, 0
      %p65 = por %p63, %p64
      %s66 = ssub.s32 %s16, %s23
      %p67 = scmp.eq.s32.totalorder %s66, 0
      %s69 = sadd.s32 %s68, 1
      %s70 = scalar_select %p67, %s68, %s69
      %p73 = pneg %p67
      %p74 = scmp.eq.s32.totalorder %s16, 7
      %p75 = por %p73, %p74
      %p76 = scmp.ne.s32.totalorder %s68, %s71
      %p77 = scmp.eq.s32.totalorder %s16, 0
      %p78 = por %p76, %p77
      %p79 = scmp.ne.s32.totalorder %s68, %s71
      %p80 = scmp.eq.s32.totalorder %s21, 7
      %p81 = por %p79, %p80
      %p82 = scmp.ne.s32.totalorder %s71, %s72
      %p83 = scmp.eq.s32.totalorder %s21, 0
      %p84 = por %p82, %p83
      %p85 = scmp.ne.s32.totalorder %s71, %s72
      %p86 = scmp.eq.s32.totalorder %s22, 7
      %p87 = por %p85, %p86
      %p89 = scmp.ne.s32.totalorder %s72, %s88
      %p90 = scmp.eq.s32.totalorder %s22, 0
      %p91 = por %p89, %p90
      %s93 = sadd.s32 %s92, 1
      %p96 = scmp.eq.s32.totalorder %s16, 7
      %p97 = scmp.ne.s32.totalorder %s92, %s94
      %p98 = scmp.eq.s32.totalorder %s16, 0
      %p99 = por %p97, %p98
      %p100 = scmp.ne.s32.totalorder %s92, %s94
      %p101 = scmp.eq.s32.totalorder %s21, 7
      %p102 = por %p100, %p101
      %p103 = scmp.ne.s32.totalorder %s94, %s95
      %p104 = scmp.eq.s32.totalorder %s21, 0
      %p105 = por %p103, %p104
      %p106 = scmp.ne.s32.totalorder %s94, %s95
      %p107 = scmp.eq.s32.totalorder %s22, 7
      %p108 = por %p106, %p107
      %p110 = scmp.ne.s32.totalorder %s95, %s109
      %p111 = scmp.eq.s32.totalorder %s22, 0
      %p112 = por %p110, %p111
      %s113 = ssub.s32 %s16, %s23
      %p114 = scmp.eq.s32.totalorder %s113, 0
      %s116 = sadd.s32 %s115, 1
      %s117 = scalar_select %p114, %s115, %s116
      %p120 = pneg %p114
      %p121 = scmp.eq.s32.totalorder %s16, 7
      %p122 = por %p120, %p121
      %p123 = scmp.ne.s32.totalorder %s115, %s118
      %p124 = scmp.eq.s32.totalorder %s16, 0
      %p125 = por %p123, %p124
      %p126 = scmp.ne.s32.totalorder %s115, %s118
      %p127 = scmp.eq.s32.totalorder %s21, 7
      %p128 = por %p126, %p127
      %p129 = scmp.ne.s32.totalorder %s118, %s119
      %p130 = scmp.eq.s32.totalorder %s21, 0
      %p131 = por %p129, %p130
      %p132 = scmp.ne.s32.totalorder %s118, %s119
      %p133 = scmp.eq.s32.totalorder %s22, 7
      %p134 = por %p132, %p133
      %p136 = scmp.ne.s32.totalorder %s119, %s135
      %p137 = scmp.eq.s32.totalorder %s22, 0
      %p138 = por %p136, %p137
      %s140 = sadd.s32 %s139, 1
      %p143 = scmp.eq.s32.totalorder %s16, 7
      %p144 = scmp.ne.s32.totalorder %s139, %s141
      %p145 = scmp.eq.s32.totalorder %s16, 0
      %p146 = por %p144, %p145
      %p147 = scmp.ne.s32.totalorder %s139, %s141
      %p148 = scmp.eq.s32.totalorder %s21, 7
      %p149 = por %p147, %p148
      %p150 = scmp.ne.s32.totalorder %s141, %s142
      %p151 = scmp.eq.s32.totalorder %s21, 0
      %p152 = por %p150, %p151
      %p153 = scmp.ne.s32.totalorder %s141, %s142
      %p154 = scmp.eq.s32.totalorder %s22, 7
      %p155 = por %p153, %p154
      %p157 = scmp.ne.s32.totalorder %s142, %s156
      %p158 = scmp.eq.s32.totalorder %s22, 0
      %p159 = por %p157, %p158
      %p160 = scmp.le.s32.totalorder 1, %s16
      %p161 = scmp.lt.s32.totalorder %s16, 9
      %p162 = pnand %p160, %p161
      %p163 = pneg %p162
      // Predicated region
      $region9: #{tpu_custom_call.1} parent=5 // pred_check
        _
      $region10: #{tpu_custom_call.1} parent=5 // pred_check_branch
        %165 = sbr.rel (%p162) target = $region12
      $region11: #{tpu_custom_call.1} parent=5 // pred_region
        %s166 = ssub.s32 %s16, 1
        // Predicated region
        $region13: #{tpu_custom_call.1} parent=11 // pred_check
          %p167 = pneg %p37
        $region14: #{tpu_custom_call.1} parent=11 // pred_check_branch
          %169 = sbr.rel (%p167) target = $region16
        $region15: #{tpu_custom_call.1} parent=11 // pred_region
          %s171 = ssub.s32 64, 64
          %172 = vsyncadd [#allocation5], %s171
          %s174 = sshll.u32 %s0, 4
          %s175 = int_to_ptr.vmem [resolvable:$true] %s174
          %177 = dma.vmem_to_smem %s175, 64, [#allocation2], [#allocation5]
        $region16: #{tpu_custom_call.1} parent=11 // pred_fallthru
          _
        // Predicated region
        $region17: #{tpu_custom_call.1} parent=11 // pred_check
          %p178 = pneg %p58
        $region18: #{tpu_custom_call.1} parent=11 // pred_check_branch
          %180 = sbr.rel (%p178) target = $region20
        $region19: #{tpu_custom_call.1} parent=11 // pred_region
          _
        $region20: #{tpu_custom_call.1} parent=11 // pred_fallthru
          _
        // Predicated region
        $region21: #{tpu_custom_call.1} parent=11 // pred_check
          %p181 = pneg %p105
        $region22: #{tpu_custom_call.1} parent=11 // pred_check_branch
          %183 = sbr.rel (%p181) target = $region24
        $region23: #{tpu_custom_call.1} parent=11 // pred_region
          _
        $region24: #{tpu_custom_call.1} parent=11 // pred_fallthru
          _
      $region12: #{tpu_custom_call.1} parent=5 // pred_fallthru
        _
      %p184 = scmp.lt.s32.totalorder %s16, 8
      // Predicated region
      $region25: #{tpu_custom_call.1} parent=5 // pred_check
        %p185 = pneg %p184
      $region26: #{tpu_custom_call.1} parent=5 // pred_check_branch
        %187 = sbr.rel (%p185) target = $region28
      $region27: #{tpu_custom_call.1} parent=5 // pred_region
        // Predicated region
        $region29: #{tpu_custom_call.1} parent=27 // pred_check
          %p188 = pneg %p78
        $region30: #{tpu_custom_call.1} parent=27 // pred_check_branch
          %190 = sbr.rel (%p188) target = $region32
        $region31: #{tpu_custom_call.1} parent=27 // pred_region
          %s191 = sand.u32 %s68, 1
          %s192 = scalar_lea.sflag [#allocation3], %s191
          %s193 = sand.u32 %s68, 1
          %s194 = smul.addr %s193, 16
          %s195 = scalar_lea.vmem [#allocation6], %s194
          %s197 = ssub.s32 256, 256
          %198 = vsyncadd %s192, %s197
          %s199 = smul.addr %s16, 2
          %s200 = smul.addr %s199, 128
          %s201 = scalar_lea.hbm %s2, %s200
          %s203 = sshll.u32 %s195, 4
          %s204 = int_to_ptr.vmem [resolvable:$true] %s203
          %206 = dma.hbm_to_vmem [thread:$0]  %s201, 256, %s204, %s192
        $region32: #{tpu_custom_call.1} parent=27 // pred_fallthru
          _
        // Predicated region
        $region33: #{tpu_custom_call.1} parent=27 // pred_check
          %p207 = pneg %p125
        $region34: #{tpu_custom_call.1} parent=27 // pred_check_branch
          %209 = sbr.rel (%p207) target = $region36
        $region35: #{tpu_custom_call.1} parent=27 // pred_region
          %p210 = scmp.lt.s32.totalorder %s16, 7
          %s211 = scalar_select %p210, %s16, 7
          %s212 = smul.addr %s211, 8
          %s213 = scalar_lea.vmem %s4, %s212
        $region36: #{tpu_custom_call.1} parent=27 // pred_fallthru
          _
      $region28: #{tpu_custom_call.1} parent=5 // pred_fallthru
        _
      %p214 = scmp.le.s32.totalorder 1, %s16
      %p215 = scmp.lt.s32.totalorder %s16, 9
      %p216 = pnand %p214, %p215
      %p217 = pneg %p216
      // Predicated region
      $region37: #{tpu_custom_call.1} parent=5 // pred_check
        _
      $region38: #{tpu_custom_call.1} parent=5 // pred_check_branch
        %219 = sbr.rel (%p216) target = $region40
      $region39: #{tpu_custom_call.1} parent=5 // pred_region
        %s220 = ssub.s32 %s16, 1
        // Predicated region
        $region41: #{tpu_custom_call.1} parent=39 // pred_check
          %p221 = pneg %p37
        $region42: #{tpu_custom_call.1} parent=39 // pred_check_branch
          %223 = sbr.rel (%p221) target = $region44
        $region43: #{tpu_custom_call.1} parent=39 // pred_region
          %224 = dma.done [#allocation5], 64
        $region44: #{tpu_custom_call.1} parent=39 // pred_fallthru
          _
        %s225 = sand.u32 %s71, 1
        %s226 = scalar_lea.sflag [#allocation3], %s225
        %s227 = sand.u32 %s71, 1
        %s228 = smul.addr %s227, 16
        %s229 = scalar_lea.vmem [#allocation6], %s228
        // Predicated region
        $region45: #{tpu_custom_call.1} parent=39 // pred_check
          %p230 = pneg %p84
        $region46: #{tpu_custom_call.1} parent=39 // pred_check_branch
          %232 = sbr.rel (%p230) target = $region48
        $region47: #{tpu_custom_call.1} parent=39 // pred_region
          %233 = dma.done %s226, 256
        $region48: #{tpu_custom_call.1} parent=39 // pred_fallthru
          _
        %234 = sfence
        %p235 = pneg %p37
        %p236 = pneg %p34
        %p237 = pneg %p58
        %p238 = pneg %p55
        %s239 = sand.u32 %s71, 1
        %s240 = scalar_lea.sflag [#allocation3], %s239
        %s241 = sand.u32 %s71, 1
        %s242 = smul.addr %s241, 16
        %s243 = scalar_lea.vmem [#allocation6], %s242
        %p244 = pneg %p84
        %p245 = pneg %p81
        %p246 = pneg %p105
        %p247 = pneg %p102
        %p248 = scmp.lt.s32.totalorder %s21, 7
        %s249 = scalar_select %p248, %s21, 7
        %s250 = smul.addr %s249, 8
        %s251 = scalar_lea.vmem %s4, %s250
        %p252 = pneg %p131
        %p253 = pneg %p128
        %p254 = pneg %p152
        %p255 = pneg %p149
        %p256 = scmp.lt.s32.totalorder %s21, 7
        %s257 = scalar_select %p256, %s21, 7
        %s258 = smul.addr %s257, 8
        %s259 = scalar_lea.vmem %s4, %s258
        %p260 = scmp.eq.s32.totalorder %s21, 0
        // Predicated region
        $region49: #{tpu_custom_call.1} parent=39 // pred_check
          %p261 = pneg %p260
        $region50: #{tpu_custom_call.1} parent=39 // pred_check_branch
          %263 = sbr.rel (%p261) target = $region52
        $region51: #{tpu_custom_call.1} parent=39 // pred_region
          %v264 = vld [vmem:[%s1] sm:$0xff]
          %v265 = vld [vmem:[%s1 + $0x8] sm:$0xff]
          %266 = vst [vmem:[#allocation7] sm:$0xff] %v264
          %267 = vst [vmem:[#allocation7 + $0x8] sm:$0xff] %v265
        $region52: #{tpu_custom_call.1} parent=39 // pred_fallthru
          _
        %v268 = vld [vmem:[#allocation7] sm:$0xff]
        %v269 = vld [vmem:[#allocation7 + $0x8] sm:$0xff]
        %v270 = vld [vmem:[%s3] sm:$0xff]
        %v271 = vld [vmem:[%s259] sm:$0xff]
        %273 = vset.pattern.permute.xlu0 0
        %274 = vperm.xlu0 %273, %v271
        %v275 = vpop.permute.xlu0 %274
        %vm277 = vcmask 64512
        %v279 = vsel %vm277, %v270, 0
        %281 = vmatprep.subr.mxu0 %v269
        %282 = vmatpush1.msra.mxu0 %v268
        %283 = vmatprep.subr.mxu0 0.0
        %284 = vmatpush1.msra.mxu0 0.0
        %285 = vmatprep.subr.mxu0 0.0
        %286 = vmatpush1.msra.mxu0 0.0
        %287 = vmatprep.subr.mxu0 0.0
        %288 = vmatpush1.msra.mxu0 0.0
        %289 = vmatprep.subr.mxu0 0.0
        %290 = vmatpush1.msra.mxu0 0.0
        %291 = vmatprep.subr.mxu0 0.0
        %292 = vmatpush1.msra.mxu0 0.0
        %293 = vmatprep.subr.mxu0 0.0
        %294 = vmatpush1.msra.mxu0 0.0
        %295 = vmatprep.subr.mxu0 0.0
        %296 = vmatpush1.msra.mxu0 0.0
        %297 = vmatprep.subr.mxu0 0.0
        %298 = vmatpush1.msra.mxu0 0.0
        %299 = vmatprep.subr.mxu0 0.0
        %300 = vmatpush1.msra.mxu0 0.0
        %301 = vmatprep.subr.mxu0 0.0
        %302 = vmatpush1.msra.mxu0 0.0
        %303 = vmatprep.subr.mxu0 0.0
        %304 = vmatpush1.msra.mxu0 0.0
        %305 = vmatprep.subr.mxu0 0.0
        %306 = vmatpush1.msra.mxu0 0.0
        %307 = vmatprep.subr.mxu0 0.0
        %308 = vmatpush1.msra.mxu0 0.0
        %309 = vmatprep.subr.mxu0 0.0
        %310 = vmatpush1.msra.mxu0 0.0
        %311 = vmatprep.subr.mxu0 0.0
        %312 = vmatpush1.msra.mxu0 0.0
        %313 = vmatprep.subr.mxu0 0.0
        %314 = vmatpush1.msra.mxu0 0.0
        %315 = vmatprep.subr.mxu0 0.0
        %316 = vmatpush1.msra.mxu0 0.0
        %317 = vmatprep.subr.mxu0 0.0
        %318 = vmatpush1.msra.mxu0 0.0
        %319 = vmatprep.subr.mxu0 0.0
        %320 = vmatpush1.msra.mxu0 0.0
        %321 = vmatprep.subr.mxu0 0.0
        %322 = vmatpush1.msra.mxu0 0.0
        %323 = vmatprep.subr.mxu0 0.0
        %324 = vmatpush1.msra.mxu0 0.0
        %325 = vmatprep.subr.mxu0 0.0
        %326 = vmatpush1.msra.mxu0 0.0
        %327 = vmatprep.subr.mxu0 0.0
        %328 = vmatpush1.msra.mxu0 0.0
        %329 = vmatprep.subr.mxu0 0.0
        %330 = vmatpush1.msra.mxu0 0.0
        %331 = vmatprep.subr.mxu0 0.0
        %332 = vmatpush1.msra.mxu0 0.0
        %333 = vmatprep.subr.mxu0 0.0
        %334 = vmatpush1.msra.mxu0 0.0
        %335 = vmatprep.subr.mxu0 0.0
        %336 = vmatpush1.msra.mxu0 0.0
        %337 = vmatprep.subr.mxu0 0.0
        %338 = vmatpush1.msra.mxu0 0.0
        %339 = vmatprep.subr.mxu0 0.0
        %340 = vmatpush1.msra.mxu0 0.0
        %341 = vmatprep.subr.mxu0 0.0
        %342 = vmatpush1.msra.mxu0 0.0
        %343 = vmatprep.subr.mxu0 0.0
        %344 = vmatpush1.msra.mxu0 0.0
        %345 = vmatprep.mubr.f32.mxu0 0.0
        %346 = vmatmul.mubr.f32.gmra.mrb[0].mxu0 %v279
        %v347 = vpop.f32.mrb[0].mxu0
        %v348 = vadd.f32 %v275, %v347
        %v349 = vpop.f32.mrb[0].mxu0
        %v350 = vadd.f32 %v275, %v349
        %351 = vdwg.mxu0
        %v352 = vtanh.pop %v348
        %v353 = vtanh.pop %v350
        %s354 = sld [smem:[#allocation2 + %s21]]
        %s355 = sshra.s32 %s21, 7
        %s356 = sand.u32 %s21, 127
        %s357 = sadd.s32 %s355, 1
        %s358 = smul.u32 %s357, 128
        %s359 = sshra.s32 %s21, 7
        %s360 = sand.u32 %s21, 127
        %s361 = sadd.s32 %s358, %s360
        %s362 = sld [smem:[#allocation2 + %s361]]
        %s363 = sadd.s32 %s355, 2
        %s364 = smul.u32 %s363, 128
        %s365 = sadd.s32 %s364, %s360
        %s366 = sld [smem:[#allocation2 + %s365]]
        %v367 = vstv %s354
        %v368 = vmul.f32 %v367, %v268
        %v369 = vmul.f32 %v367, %v269
        %v370 = vstv %s362
        %v371 = vmul.f32 %v370, %v352
        %v372 = vmul.f32 %v370, %v353
        %v373 = vsub.f32 %v368, %v371
        %v374 = vsub.f32 %v369, %v372
        %v375 = vld [vmem:[%s229] sm:$0xff]
        %v376 = vld [vmem:[%s229 + $0x8] sm:$0xff]
        %v377 = vstv %s366
        %v378 = vmul.f32 %v377, %v375
        %v379 = vmul.f32 %v377, %v376
        %v380 = vadd.f32 %v373, %v378
        %v381 = vadd.f32 %v374, %v379
        %382 = vst [vmem:[#allocation7] sm:$0xff] %v380
        %383 = vst [vmem:[#allocation7 + $0x8] sm:$0xff] %v381
        %p384 = scmp.eq.s32.totalorder %s21, 7
        // Predicated region
        $region53: #{tpu_custom_call.1} parent=39 // pred_check
          %p385 = pneg %p384
        $region54: #{tpu_custom_call.1} parent=39 // pred_check_branch
          %387 = sbr.rel (%p385) target = $region56
        $region55: #{tpu_custom_call.1} parent=39 // pred_region
          %v388 = vmax.f32 %v380, -1.0
          %v389 = vmax.f32 %v381, -1.0
          %v390 = vmin.f32 %v388, 1.0
          %v391 = vmin.f32 %v389, 1.0
          %392 = vst [vmem:[#allocation7] sm:$0xff] %v390
          %393 = vst [vmem:[#allocation7 + $0x8] sm:$0xff] %v391
        $region56: #{tpu_custom_call.1} parent=39 // pred_fallthru
          _
        // Predicated region
        $region57: #{tpu_custom_call.1} parent=39 // pred_check
          %p394 = pneg %p149
        $region58: #{tpu_custom_call.1} parent=39 // pred_check_branch
          %396 = sbr.rel (%p394) target = $region60
        $region59: #{tpu_custom_call.1} parent=39 // pred_region
          %s398 = ssub.s32 256, 256
          %399 = vsyncadd [#allocation4], %s398
          %s401 = sshll.u32 [#allocation7], 4
          %s402 = int_to_ptr.vmem [resolvable:$true] %s401
          %404 = dma.vmem_to_hbm [thread:$0]  %s402, 256, %s5, [#allocation4]
        $region60: #{tpu_custom_call.1} parent=39 // pred_fallthru
          _
        // Predicated region
        $region61: #{tpu_custom_call.1} parent=39 // pred_check
          %p405 = pneg %p149
        $region62: #{tpu_custom_call.1} parent=39 // pred_check_branch
          %407 = sbr.rel (%p405) target = $region64
        $region63: #{tpu_custom_call.1} parent=39 // pred_region
          %408 = dma.done [#allocation4], 256
        $region64: #{tpu_custom_call.1} parent=39 // pred_fallthru
          _
      $region40: #{tpu_custom_call.1} parent=5 // pred_fallthru
        _
      %p409 = scmp.le.s32.totalorder 2, %s16
      // Predicated region
      $region65: #{tpu_custom_call.1} parent=5 // pred_check
        %p410 = pneg %p409
      $region66: #{tpu_custom_call.1} parent=5 // pred_check_branch
        %412 = sbr.rel (%p410) target = $region68
      $region67: #{tpu_custom_call.1} parent=5 // pred_region
        %s413 = ssub.s32 %s16, 2
      $region68: #{tpu_custom_call.1} parent=5 // pred_fallthru
        _
    $region6: #{tpu_custom_call.1} parent=1 // loop_footer
      %s20 = sadd.s32 1, %s16
    $region7: #{tpu_custom_call.1} parent=1 // loop_footer_branch
      %15 = sbr.rel target = $region3
    $region8: #{tpu_custom_call.1} parent=1 // loop_exit
      _
    %414 = vsyncpa [#allocation3], 1
    %s415 = scalar_lea.sflag [#allocation3], 1
    %416 = vsyncpa %s415, 1
    %417 = vsyncpa [#allocation4], 1
    %s418 = scalar_lea.sflag [#allocation4], 1
    %419 = vsyncpa %s418, 1
    %420 = vsyncpa [#allocation5], 1
    %s421 = scalar_lea.sflag [#allocation5], 1
    %422 = vsyncpa %s421, 1

</llo_original>
